<compile_context>
chip_gen: v5e
topology: v5e:2x2
jax: 0.10.0
libtpu: 0.0.40
codegen_flags: <defaults>
</compile_context>

<pallas_src>
import jax
import jax.numpy as jnp
from jax import lax
from jax.experimental import pallas as pl
from jax.experimental.pallas import tpu as pltpu


def _round_up(x, m):
    return (x + m - 1) // m * m


def _vmem_limit(est_bytes):
    # Explicit scoped-VMEM cap: clears v5e's 16 MiB scoped default and stays
    # under v7x's 64 MiB/TC physical VMEM.  2x headroom for compiler temps.
    return int(min(max(2 * est_bytes, 16 * 1024 * 1024), 60 * 1024 * 1024))


# ---------------------------------------------------------------------------
# Kernel 1: per-edge messages   msg[e] = src_emb[src[e]] + edge_emb[e]
# Grid: (edge tiles,) -- each edge tile computed exactly once ("parallel").
# ---------------------------------------------------------------------------
def message_kernel(src_idx_ref, src_emb_ref, edge_emb_ref, msg_ref):
    te = src_idx_ref.shape[0]
    n_src = src_emb_ref.shape[0]

    src_ids = src_idx_ref[...]                          # (TE, 1) int32, -1 = pad
    valid = src_ids >= 0                                # (TE, 1) bool

    # Gather one-hot built in vregs (VPU iota + compare) -> MXU row gather.
    src_iota = lax.broadcasted_iota(jnp.int32, (te, n_src), 1)
    gather = (src_iota == src_ids).astype(src_emb_ref.dtype)

    msg = jnp.dot(gather, src_emb_ref[...], preferred_element_type=jnp.float32)
    msg = msg + edge_emb_ref[...].astype(jnp.float32)
    # The last edge tile may be ragged (edge_emb is streamed unpadded); zero
    # the invalid rows so stale VMEM can never leak into kernel 2's matmul.
    msg_ref[...] = jnp.where(valid, msg, 0.0).astype(msg_ref.dtype)


# ---------------------------------------------------------------------------
# Kernel 2: scatter-sum over edges + mean normalize.
# Grid: (dst tiles ["parallel"], edge tiles ["arbitrary" = reduction]).
# ---------------------------------------------------------------------------
def scatter_mean_kernel(dst_idx_ref, msg_ref, out_ref, acc_ref, deg_ref):
    e_tile = pl.program_id(1)

    @pl.when(e_tile == 0)
    def _init():
        acc_ref[...] = jnp.zeros_like(acc_ref)
        deg_ref[...] = jnp.zeros_like(deg_ref)

    td = acc_ref.shape[0]
    te = msg_ref.shape[0]

    dst_ids = dst_idx_ref[...]                          # (1, TE) int32, -1 = pad
    d_base = pl.program_id(0) * td
    dst_iota = lax.broadcasted_iota(jnp.int32, (td, te), 0) + d_base
    scatter = (dst_iota == dst_ids).astype(jnp.float32)   # (TD, TE) 0/1

    acc_ref[...] += jnp.dot(scatter, msg_ref[...],
                            preferred_element_type=jnp.float32)
    deg_ref[...] += jnp.sum(scatter, axis=1, keepdims=True)

    @pl.when(e_tile == pl.num_programs(1) - 1)
    def _finalize():
        deg = deg_ref[...]
        inv = jnp.where(deg > 0.0, 1.0 / jnp.maximum(deg, 1.0), 0.0)
        out_ref[...] = (acc_ref[...] * inv).astype(out_ref.dtype)


def agg_layer(src_idx, dst_idx, src_embedding, edge_embedding, num_dst_nodes,
              *, dst_tile=256, edge_tile=512):
    """Pallas implementation of AGGLayer.forward.

    src_idx, dst_idx : int  [E]          edge endpoints (dst < num_dst_nodes)
    src_embedding    : f32 [N_src, D]
    edge_embedding   : f32 [E, D]
    returns          : f32 [num_dst_nodes, D]  mean-aggregated messages
    """
    E = edge_embedding.shape[0]
    n_src, D = src_embedding.shape
    assert src_idx.shape == (E,) and dst_idx.shape == (E,), \
        "every edge should have a type"
    assert dst_tile % 8 == 0, "dst_tile must be a multiple of 8 (sublane)"
    assert edge_tile % 128 == 0, "edge_tile must be a multiple of 128 (lane)"
    # NOTE: dst indices >= num_dst_nodes are silently dropped (they land in
    # padded output rows), unlike DGL which would raise.

    # Lane-dense embedding width / MXU-aligned gather contraction: pad only
    # when unaligned so the common aligned case costs no extra HBM traffic.
    D_pad = _round_up(D, 128)
    if D_pad != D:
        src_embedding = jnp.pad(src_embedding, ((0, 0), (0, D_pad - D)))
        edge_embedding = jnp.pad(edge_embedding, ((0, 0), (0, D_pad - D)))
    n_src_pad = _round_up(n_src, 128)
    if n_src_pad != n_src:
        src_embedding = jnp.pad(src_embedding, ((0, n_src_pad - n_src), (0, 0)))

    E_pad = _round_up(max(E, 1), edge_tile)
    n_dst_pad = _round_up(max(num_dst_nodes, 1), dst_tile)
    n_edge_tiles = E_pad // edge_tile
    n_dst_tiles = n_dst_pad // dst_tile

    # Only the O(E) int32 index arrays are padded; -1 marks padding and makes
    # the corresponding one-hot rows / columns all-zero.
    src_idx_p = jnp.full((E_pad, 1), -1, jnp.int32).at[:E, 0].set(
        src_idx.astype(jnp.int32))
    dst_idx_p = jnp.full((1, E_pad), -1, jnp.int32).at[0, :E].set(
        dst_idx.astype(jnp.int32))

    # ---------------- kernel 1: per-edge messages -------------------------
    k1_vmem = (
        n_src_pad * D_pad * 4              # resident src_emb (single-buffered)
        + 2 * edge_tile * D_pad * 4        # edge_emb double buffer
        + 2 * edge_tile * D_pad * 4        # msg output double buffer
        + 2 * edge_tile * 128 * 4          # src index tiles (lane-padded)
        + 2 * edge_tile * n_src_pad * 4    # in-kernel one-hot temporaries
    )
    k1_cost = pl.CostEstimate(
        flops=2 * E_pad * n_src_pad * D_pad + E_pad * D_pad,
        transcendentals=0,
        bytes_accessed=4 * (n_src_pad * D_pad + E * D_pad + E_pad * D_pad
                            + E_pad),
    )
    msg = pl.pallas_call(
        message_kernel,
        out_shape=jax.ShapeDtypeStruct((E_pad, D_pad), jnp.float32),
        grid=(n_edge_tiles,),
        in_specs=[
            pl.BlockSpec((edge_tile, 1), lambda e: (e, 0)),
            # Constant index map -> single-buffer the biggest VMEM consumer.
            pl.BlockSpec((n_src_pad, D_pad), lambda e: (0, 0),
                         pipeline_mode=pl.Buffered(1)),
            pl.BlockSpec((edge_tile, D_pad), lambda e: (e, 0)),
        ],
        out_specs=pl.BlockSpec((edge_tile, D_pad), lambda e: (e, 0)),
        compiler_params=pltpu.CompilerParams(
            dimension_semantics=("parallel",),
            vmem_limit_bytes=_vmem_limit(k1_vmem),
        ),
        cost_estimate=k1_cost,
    )(src_idx_p, src_embedding, edge_embedding)

    # ---------------- kernel 2: scatter-sum + mean -------------------------
    k2_vmem = (
        2 * edge_tile * D_pad * 4          # msg double buffer
        + 2 * dst_tile * D_pad * 4         # out double buffer
        + dst_tile * D_pad * 4             # acc scratch
        + dst_tile * 128 * 4               # deg scratch (lane-padded)
        + 2 * 8 * edge_tile * 4            # dst index tiles (sublane-padded)
        + 2 * dst_tile * edge_tile * 4     # scatter one-hot temporaries
    )
    k2_cost = pl.CostEstimate(
        flops=2 * n_dst_pad * E_pad * D_pad,
        transcendentals=0,
        bytes_accessed=4 * (n_dst_tiles * E_pad * D_pad + n_dst_pad * D_pad
                            + n_dst_tiles * E_pad),
    )
    out = pl.pallas_call(
        scatter_mean_kernel,
        out_shape=jax.ShapeDtypeStruct((n_dst_pad, D_pad), jnp.float32),
        grid=(n_dst_tiles, n_edge_tiles),
        in_specs=[
            pl.BlockSpec((1, edge_tile), lambda d, e: (0, e)),
            # TODO(synk): on v7x, if HBM streaming of msg is exposed once the
            # MXU redundancy is gone, deepen to pipeline_mode=pl.Buffered(3).
            pl.BlockSpec((edge_tile, D_pad), lambda d, e: (e, 0)),
        ],
        out_specs=pl.BlockSpec((dst_tile, D_pad), lambda d, e: (d, 0)),
        scratch_shapes=[
            pltpu.VMEM((dst_tile, D_pad), jnp.float32),   # sum accumulator
            pltpu.VMEM((dst_tile, 1), jnp.float32),       # in-degree
        ],
        compiler_params=pltpu.CompilerParams(
            dimension_semantics=("parallel", "arbitrary"),
            vmem_limit_bytes=_vmem_limit(k2_vmem),
        ),
        cost_estimate=k2_cost,
    )(dst_idx_p, msg)

    return out[:num_dst_nodes, :D]


def agg_layer_ref(src_idx, dst_idx, src_embedding, edge_embedding, num_dst_nodes):
    """Pure-JAX reference (segment mean) for correctness check."""
    msg = src_embedding[src_idx] + edge_embedding
    summed = jax.ops.segment_sum(msg, dst_idx, num_segments=num_dst_nodes)
    deg = jax.ops.segment_sum(jnp.ones((msg.shape[0],), jnp.float32), dst_idx,
                              num_segments=num_dst_nodes)
    return jnp.where(deg[:, None] > 0, summed / jnp.maximum(deg, 1.0)[:, None], 0.0)


if __name__ == "__main__":
    # Small deterministic graph sized to exercise: multiple edge tiles with a
    # ragged last tile (600 edges @ edge_tile=256 -> 256/256/88), multiple dst
    # tiles (200 dst nodes @ dst_tile=128 -> 2 tiles) and src padding
    # (200 -> 256).  Hidden width 128 keeps everything lane-dense.
    N = 200      # num src nodes == num dst nodes (homogeneous graph)
    E = 600      # num edges
    D = 128      # embedding width

    key = jax.random.PRNGKey(0)
    k_src, k_dst, k_se, k_ee = jax.random.split(key, 4)

    src_idx = jax.random.randint(k_src, (E,), 0, N, dtype=jnp.int32)
    dst_idx = jax.random.randint(k_dst, (E,), 0, N, dtype=jnp.int32)
    src_embedding = jax.random.normal(k_se, (N, D), dtype=jnp.float32)
    edge_embedding = jax.random.normal(k_ee, (E, D), dtype=jnp.float32)

    out = agg_layer(src_idx, dst_idx, src_embedding, edge_embedding, N,
                    dst_tile=128, edge_tile=256)
    out = jax.block_until_ready(out)

    ref = agg_layer_ref(src_idx, dst_idx, src_embedding, edge_embedding, N)
    assert out.shape == (N, D)
    assert jnp.allclose(out, ref, atol=1e-5, rtol=1e-5), \
        float(jnp.max(jnp.abs(out - ref)))

    print("KERNEL_OK")
</pallas_src>

<mosaic_0001>
module attributes {stable_mosaic.version = 11 : i64} {
  func.func @message_kernel(%arg0: i32, %arg1: memref<256x1xi32, #tpu.memory_space<vmem>>, %arg2: memref<256x128xf32, #tpu.memory_space<vmem>>, %arg3: memref<256x128xf32, #tpu.memory_space<vmem>>, %arg4: memref<256x128xf32, #tpu.memory_space<vmem>>) attributes {dimension_semantics = [#tpu.dimension_semantics<parallel>], iteration_bounds = array<i64: 3>, scalar_prefetch = 0 : i64, scratch_operands = 0 : i64, tpu.core_type = #tpu.core_type<tc>, window_params = [{transform_indices = @transform_0, window_bounds = array<i64: 256, 1>}, {pipeline_mode = #tpu.pipeline_mode<synchronous>, transform_indices = @transform_1, window_bounds = array<i64: 256, 128>}, {transform_indices = @transform_2, window_bounds = array<i64: 256, 128>}, {transform_indices = @transform_3, window_bounds = array<i64: 256, 128>}]} {
    %c0 = arith.constant 0 : index
    %c0_0 = arith.constant 0 : index
    %0 = vector.load %arg1[%c0, %c0_0] : memref<256x1xi32, #tpu.memory_space<vmem>>, vector<256x1xi32>
    %c0_i32 = arith.constant 0 : i32
    %1 = vector.broadcast %c0_i32 : i32 to vector<256x1xi32>
    %2 = arith.cmpi sge, %0, %1 : vector<256x1xi32>
    %3 = tpu.iota {dimensions = array<i32: 1>} : vector<256x256xi32>
    %4 = vector.broadcast %0 : vector<256x1xi32> to vector<256x256xi32>
    %5 = arith.cmpi eq, %3, %4 : vector<256x256xi32>
    %6 = arith.extui %5 : vector<256x256xi1> to vector<256x256xi32>
    %7 = arith.sitofp %6 : vector<256x256xi32> to vector<256x256xf32>
    %c0_1 = arith.constant 0 : index
    %c0_2 = arith.constant 0 : index
    %8 = vector.load %arg2[%c0_1, %c0_2] : memref<256x128xf32, #tpu.memory_space<vmem>>, vector<256x128xf32>
    %cst = arith.constant dense<0.000000e+00> : vector<256x128xf32>
    %9 = tpu.matmul %7, %8, %cst {dimension_numbers = #tpu.dot_dimension_numbers<[1], [0], [0], [1], [0, 0, 1, 1], [], []>} : vector<256x256xf32>, vector<256x128xf32>, vector<256x128xf32> -> vector<256x128xf32>
    %c0_3 = arith.constant 0 : index
    %c0_4 = arith.constant 0 : index
    %10 = vector.load %arg3[%c0_3, %c0_4] : memref<256x128xf32, #tpu.memory_space<vmem>>, vector<256x128xf32>
    %11 = arith.addf %9, %10 : vector<256x128xf32>
    %cst_5 = arith.constant 0.000000e+00 : f32
    %12 = vector.shape_cast %2 : vector<256x1xi1> to vector<256x1xi1>
    %13 = vector.broadcast %12 : vector<256x1xi1> to vector<256x128xi1>
    %14 = vector.broadcast %cst_5 : f32 to vector<256x128xf32>
    %15 = arith.select %13, %11, %14 : vector<256x128xi1>, vector<256x128xf32>
    %c0_6 = arith.constant 0 : index
    %c0_7 = arith.constant 0 : index
    %16 = vector.load %arg4[%c0_6, %c0_7] : memref<256x128xf32, #tpu.memory_space<vmem>>, vector<256x128xf32>
    tpu.vector_store %arg4[%c0_6, %c0_7], %15 {strides = array<i32>} : memref<256x128xf32, #tpu.memory_space<vmem>>, vector<256x128xf32>,
    return
  }
  func.func @transform_0(%arg0: i32) -> (i32, i32) {
    %c0_i32 = arith.constant 0 : i32
    %c0_i32_0 = arith.constant 0 : i32
    return %arg0, %c0_i32 : i32, i32
  }
  func.func @transform_1(%arg0: i32) -> (i32, i32) {
    %c0_i32 = arith.constant 0 : i32
    %c0_i32_0 = arith.constant 0 : i32
    %c0_i32_1 = arith.constant 0 : i32
    return %c0_i32, %c0_i32_0 : i32, i32
  }
  func.func @transform_2(%arg0: i32) -> (i32, i32) {
    %c0_i32 = arith.constant 0 : i32
    %c0_i32_0 = arith.constant 0 : i32
    return %arg0, %c0_i32 : i32, i32
  }
  func.func @transform_3(%arg0: i32) -> (i32, i32) {
    %c0_i32 = arith.constant 0 : i32
    %c0_i32_0 = arith.constant 0 : i32
    return %arg0, %c0_i32 : i32, i32
  }
}

</mosaic_0001>

<llo_original>
// kernel: tpu_custom_call.1
$region0: #{tpu_custom_call.1}
  #allocation0 [shape = 'u32[]', space=smem, size = 0x4, offset = 0x4, fixed_abs, tag = 'smem constant byte address 0x4 - core index']
  #allocation1 [shape = 'u32[72,128]{1,0:T(1,128)}', space=vmem, size = 0x9000, scoped, tag = 'internal scratch']
  %s0 = inlined_call_operand.vmem [shape: s32[768,1], index: 0, kind: input, shape index: {}]
  %s1 = inlined_call_operand.hbm [shape: f32[256,128], index: 1, kind: input, shape index: {}]
  %s2 = inlined_call_operand.vmem [shape: f32[600,128], index: 2, kind: input, shape index: {}]
  %s3 = inlined_call_operand.hbm [shape: f32[768,128], index: 3, kind: output, shape index: {}]
  %s4 = sld [smem:[#allocation0]]
  $region49: #{tpu_custom_call.1} parent=0
    _
  %s6 = ssub.s32 1, %s4
  %s7 = scalar_select 0, %s6, %s4
  $region1: #{tpu_custom_call.1} parent=0
    #allocation2 [shape = 'u8[131072]{0}', space=vmem, size = 0x20000, scoped, tag = 'input window, operand 1, single buffered']
    #allocation3 [shape = 's32[2]{0}', space=sflag, size = 0x8, scoped, tag = 'scoped memory for tpu_custom_call.1']
    #allocation4 [shape = 's32[2]{0}', space=sflag, size = 0x8, scoped, tag = 'scoped memory for tpu_custom_call.1']
    #allocation5 [shape = 'u8[262144]{0}', space=vmem, size = 0x40000, scoped, tag = 'output window, operand 0']
    %8 = vsyncpa [#allocation3], 0
    %9 = vsyncpa [#allocation4], 0
    %s10 = scalar_lea.sflag [#allocation4], 1
    %11 = vsyncpa %s10, 0
    loop: start=0, step=1, limit=5
    $region2: #{tpu_custom_call.1} parent=1 // loop_pre_header
      _
    $region3: #{tpu_custom_call.1} parent=1 // loop_header
      %s13 = sphi 0, %s17
      %p14 = scmp.ge.s32.totalorder %s13, 5
      %s23 = sphi 0, %s25
      %s26 = sphi 0, %s23
      %s27 = sphi 0, %s26
      %s43 = sphi 0, %s27
      %s47 = sphi 0, %s47
      %s49 = sphi 0, %s47
      %s50 = sphi 0, %s49
      %s64 = sphi 0, %s50
      %s70 = sphi 0, %s72
      %s73 = sphi 0, %s70
      %s74 = sphi 0, %s73
      %s90 = sphi 0, %s74
      %s96 = sphi 0, %s98
      %s99 = sphi 0, %s96
      %s100 = sphi 0, %s99
      %s116 = sphi 0, %s100
    $region4: #{tpu_custom_call.1} parent=1 // loop_header_branch
      %16 = sbr.rel (%p14) target = $region8
    $region5: #{tpu_custom_call.1} parent=1 // loop_body
      %s18 = ssub.s32 %s13, 1
      %s19 = ssub.s32 %s13, 2
      %s20 = sadd.s32 %s13, 1
      %s21 = ssub.s32 %s13, %s20
      %p22 = scmp.eq.s32.totalorder %s21, 0
      %s24 = sadd.s32 %s23, 1
      %s25 = scalar_select %p22, %s23, %s24
      %p28 = pneg %p22
      %p29 = scmp.eq.s32.totalorder %s13, 2
      %p30 = por %p28, %p29
      %p31 = scmp.ne.s32.totalorder %s23, %s26
      %p32 = scmp.eq.s32.totalorder %s13, 0
      %p33 = por %p31, %p32
      %p34 = scmp.ne.s32.totalorder %s23, %s26
      %p35 = scmp.eq.s32.totalorder %s18, 2
      %p36 = por %p34, %p35
      %p37 = scmp.ne.s32.totalorder %s26, %s27
      %p38 = scmp.eq.s32.totalorder %s18, 0
      %p39 = por %p37, %p38
      %p40 = scmp.ne.s32.totalorder %s26, %s27
      %p41 = scmp.eq.s32.totalorder %s19, 2
      %p42 = por %p40, %p41
      %p44 = scmp.ne.s32.totalorder %s27, %s43
      %p45 = scmp.eq.s32.totalorder %s19, 0
      %p46 = por %p44, %p45
      %s48 = sadd.s32 %s47, 1
      %p51 = scmp.eq.s32.totalorder %s13, 2
      %p52 = scmp.ne.s32.totalorder %s47, %s49
      %p53 = scmp.eq.s32.totalorder %s13, 0
      %p54 = por %p52, %p53
      %p55 = scmp.ne.s32.totalorder %s47, %s49
      %p56 = scmp.eq.s32.totalorder %s18, 2
      %p57 = por %p55, %p56
      %p58 = scmp.ne.s32.totalorder %s49, %s50
      %p59 = scmp.eq.s32.totalorder %s18, 0
      %p60 = por %p58, %p59
      %p61 = scmp.ne.s32.totalorder %s49, %s50
      %p62 = scmp.eq.s32.totalorder %s19, 2
      %p63 = por %p61, %p62
      %p65 = scmp.ne.s32.totalorder %s50, %s64
      %p66 = scmp.eq.s32.totalorder %s19, 0
      %p67 = por %p65, %p66
      %s68 = ssub.s32 %s13, %s20
      %p69 = scmp.eq.s32.totalorder %s68, 0
      %s71 = sadd.s32 %s70, 1
      %s72 = scalar_select %p69, %s70, %s71
      %p75 = pneg %p69
      %p76 = scmp.eq.s32.totalorder %s13, 2
      %p77 = por %p75, %p76
      %p78 = scmp.ne.s32.totalorder %s70, %s73
      %p79 = scmp.eq.s32.totalorder %s13, 0
      %p80 = por %p78, %p79
      %p81 = scmp.ne.s32.totalorder %s70, %s73
      %p82 = scmp.eq.s32.totalorder %s18, 2
      %p83 = por %p81, %p82
      %p84 = scmp.ne.s32.totalorder %s73, %s74
      %p85 = scmp.eq.s32.totalorder %s18, 0
      %p86 = por %p84, %p85
      %p87 = scmp.ne.s32.totalorder %s73, %s74
      %p88 = scmp.eq.s32.totalorder %s19, 2
      %p89 = por %p87, %p88
      %p91 = scmp.ne.s32.totalorder %s74, %s90
      %p92 = scmp.eq.s32.totalorder %s19, 0
      %p93 = por %p91, %p92
      %s94 = ssub.s32 %s13, %s20
      %p95 = scmp.eq.s32.totalorder %s94, 0
      %s97 = sadd.s32 %s96, 1
      %s98 = scalar_select %p95, %s96, %s97
      %p101 = pneg %p95
      %p102 = scmp.eq.s32.totalorder %s13, 2
      %p103 = por %p101, %p102
      %p104 = scmp.ne.s32.totalorder %s96, %s99
      %p105 = scmp.eq.s32.totalorder %s13, 0
      %p106 = por %p104, %p105
      %p107 = scmp.ne.s32.totalorder %s96, %s99
      %p108 = scmp.eq.s32.totalorder %s18, 2
      %p109 = por %p107, %p108
      %p110 = scmp.ne.s32.totalorder %s99, %s100
      %p111 = scmp.eq.s32.totalorder %s18, 0
      %p112 = por %p110, %p111
      %p113 = scmp.ne.s32.totalorder %s99, %s100
      %p114 = scmp.eq.s32.totalorder %s19, 2
      %p115 = por %p113, %p114
      %p117 = scmp.ne.s32.totalorder %s100, %s116
      %p118 = scmp.eq.s32.totalorder %s19, 0
      %p119 = por %p117, %p118
      %p120 = scmp.le.s32.totalorder 1, %s13
      %p121 = scmp.lt.s32.totalorder %s13, 4
      %p122 = pnand %p120, %p121
      %p123 = pneg %p122
      // Predicated region
      $region9: #{tpu_custom_call.1} parent=5 // pred_check
        _
      $region10: #{tpu_custom_call.1} parent=5 // pred_check_branch
        %125 = sbr.rel (%p122) target = $region12
      $region11: #{tpu_custom_call.1} parent=5 // pred_region
        %s126 = ssub.s32 %s13, 1
        // Predicated region
        $region13: #{tpu_custom_call.1} parent=11 // pred_check
          %p127 = pneg %p60
        $region14: #{tpu_custom_call.1} parent=11 // pred_check_branch
          %129 = sbr.rel (%p127) target = $region16
        $region15: #{tpu_custom_call.1} parent=11 // pred_region
          %131 = vsyncadd [#allocation3], 0
          %s132 = sshll.u32 %s1, 4
          %s133 = int_to_ptr.hbm [resolvable:$true] %s132
          %s134 = sshll.u32 [#allocation2], 4
          %s135 = int_to_ptr.vmem [resolvable:$true] %s134
          %140 = dma.hbm_to_vmem [thread:$0]  %s133, 4096, %s135, [#allocation3], 128, 128, 8
        $region16: #{tpu_custom_call.1} parent=11 // pred_fallthru
          _
      $region12: #{tpu_custom_call.1} parent=5 // pred_fallthru
        _
      %p141 = scmp.lt.s32.totalorder %s13, 3
      // Predicated region
      $region17: #{tpu_custom_call.1} parent=5 // pred_check
        %p142 = pneg %p141
      $region18: #{tpu_custom_call.1} parent=5 // pred_check_branch
        %144 = sbr.rel (%p142) target = $region20
      $region19: #{tpu_custom_call.1} parent=5 // pred_region
        // Predicated region
        $region21: #{tpu_custom_call.1} parent=19 // pred_check
          %p145 = pneg %p33
        $region22: #{tpu_custom_call.1} parent=19 // pred_check_branch
          %147 = sbr.rel (%p145) target = $region24
        $region23: #{tpu_custom_call.1} parent=19 // pred_region
          %s148 = smul.u32 32, %s13
          %p149 = scmp.lt.s32.totalorder %s148, 95
          %s150 = scalar_select %p149, %s148, 95
          %s151 = smul.addr %s150, 8
          %s152 = scalar_lea.vmem %s0, %s151
          %s153 = smul.u32 32, %s13
        $region24: #{tpu_custom_call.1} parent=19 // pred_fallthru
          _
        // Predicated region
        $region25: #{tpu_custom_call.1} parent=19 // pred_check
          %p154 = pneg %p80
        $region26: #{tpu_custom_call.1} parent=19 // pred_check_branch
          %156 = sbr.rel (%p154) target = $region28
        $region27: #{tpu_custom_call.1} parent=19 // pred_region
          %s157 = smul.u32 32, %s13
          %s158 = ssub.s32 75, %s157
          %p159 = scmp.lt.s32.totalorder %s158, 32
          %s160 = scalar_select %p159, %s158, 32
          %s161 = smul.u32 8, %s160
          %p162 = scmp.lt.s32.totalorder %s157, 74
          %s163 = scalar_select %p162, %s157, 74
          %s164 = smul.addr %s163, 8
          %s165 = scalar_lea.vmem %s2, %s164
          %s166 = smul.u32 32, %s13
          %s167 = ssub.s32 75, %s166
          %p168 = scmp.lt.s32.totalorder %s167, 32
          %s169 = scalar_select %p168, %s167, 32
          %s170 = smul.u32 8, %s169
        $region28: #{tpu_custom_call.1} parent=19 // pred_fallthru
          _
      $region20: #{tpu_custom_call.1} parent=5 // pred_fallthru
        _
      %p171 = scmp.le.s32.totalorder 1, %s13
      %p172 = scmp.lt.s32.totalorder %s13, 4
      %p173 = pnand %p171, %p172
      %p174 = pneg %p173
      // Predicated region
      $region29: #{tpu_custom_call.1} parent=5 // pred_check
        _
      $region30: #{tpu_custom_call.1} parent=5 // pred_check_branch
        %176 = sbr.rel (%p173) target = $region32
      $region31: #{tpu_custom_call.1} parent=5 // pred_region
        %s177 = ssub.s32 %s13, 1
        // Predicated region
        $region33: #{tpu_custom_call.1} parent=31 // pred_check
          %p178 = pneg %p60
        $region34: #{tpu_custom_call.1} parent=31 // pred_check_branch
          %180 = sbr.rel (%p178) target = $region36
        $region35: #{tpu_custom_call.1} parent=31 // pred_region
          %182 = dma.done [#allocation3], 4096
        $region36: #{tpu_custom_call.1} parent=31 // pred_fallthru
          _
        %s183 = smul.u32 32, %s18
        %p184 = scmp.lt.s32.totalorder %s183, 95
        %s185 = scalar_select %p184, %s183, 95
        %s186 = smul.addr %s185, 8
        %s187 = scalar_lea.vmem %s0, %s186
        %p188 = pneg %p39
        %p189 = pneg %p36
        %p190 = pneg %p60
        %p191 = pneg %p57
        %s192 = smul.u32 32, %s18
        %s193 = ssub.s32 75, %s192
        %p194 = scmp.lt.s32.totalorder %s193, 32
        %s195 = scalar_select %p194, %s193, 32
        %s196 = smul.u32 8, %s195
        %p197 = scmp.lt.s32.totalorder %s192, 74
        %s198 = scalar_select %p197, %s192, 74
        %s199 = smul.addr %s198, 8
        %s200 = scalar_lea.vmem %s2, %s199
        %p201 = pneg %p86
        %p202 = pneg %p83
        %p203 = pneg %p112
        %p204 = pneg %p109
        %s205 = sand.u32 %s99, 1
        %s206 = scalar_lea.sflag [#allocation4], %s205
        %s207 = sand.u32 %s99, 1
        %s208 = smul.addr %s207, 256
        %s209 = scalar_lea.vmem [#allocation5], %s208
        %s210 = smul.u32 32, %s18
        %p211 = scmp.lt.s32.totalorder %s210, 95
        %s212 = scalar_select %p211, %s210, 95
        %s213 = smul.addr %s212, 8
        %s214 = scalar_lea.vmem %s0, %s213
        %s215 = smul.u32 32, %s18
        %s216 = smul.u32 32, %s18
        %s217 = ssub.s32 75, %s216
        %p218 = scmp.lt.s32.totalorder %s217, 32
        %s219 = scalar_select %p218, %s217, 32
        %s220 = smul.u32 8, %s219
        %p221 = scmp.lt.s32.totalorder %s216, 74
        %s222 = scalar_select %p221, %s216, 74
        %s223 = smul.addr %s222, 8
        %s224 = scalar_lea.vmem %s2, %s223
        %s225 = smul.u32 32, %s18
        %s226 = ssub.s32 75, %s225
        %p227 = scmp.lt.s32.totalorder %s226, 32
        %s228 = scalar_select %p227, %s226, 32
        %s229 = smul.u32 8, %s228
        %s230 = smul.u32 32, %s18
        %v231 = vld [vmem:[%s214] sm:$0xff]
        %v232 = vld [vmem:[%s214 + $0x8] sm:$0xff]
        %v233 = vld [vmem:[%s214 + $0x10] sm:$0xff]
        %v234 = vld [vmem:[%s214 + $0x18] sm:$0xff]
        %v235 = vld [vmem:[%s214 + $0x20] sm:$0xff]
        %v236 = vld [vmem:[%s214 + $0x28] sm:$0xff]
        %v237 = vld [vmem:[%s214 + $0x30] sm:$0xff]
        %v238 = vld [vmem:[%s214 + $0x38] sm:$0xff]
        %v239 = vld [vmem:[%s214 + $0x40] sm:$0xff]
        %v240 = vld [vmem:[%s214 + $0x48] sm:$0xff]
        %v241 = vld [vmem:[%s214 + $0x50] sm:$0xff]
        %v242 = vld [vmem:[%s214 + $0x58] sm:$0xff]
        %v243 = vld [vmem:[%s214 + $0x60] sm:$0xff]
        %v244 = vld [vmem:[%s214 + $0x68] sm:$0xff]
        %v245 = vld [vmem:[%s214 + $0x70] sm:$0xff]
        %v246 = vld [vmem:[%s214 + $0x78] sm:$0xff]
        %v247 = vld [vmem:[%s214 + $0x80] sm:$0xff]
        %v248 = vld [vmem:[%s214 + $0x88] sm:$0xff]
        %v249 = vld [vmem:[%s214 + $0x90] sm:$0xff]
        %v250 = vld [vmem:[%s214 + $0x98] sm:$0xff]
        %v251 = vld [vmem:[%s214 + $0xa0] sm:$0xff]
        %v252 = vld [vmem:[%s214 + $0xa8] sm:$0xff]
        %v253 = vld [vmem:[%s214 + $0xb0] sm:$0xff]
        %v254 = vld [vmem:[%s214 + $0xb8] sm:$0xff]
        %v255 = vld [vmem:[%s214 + $0xc0] sm:$0xff]
        %v256 = vld [vmem:[%s214 + $0xc8] sm:$0xff]
        %v257 = vld [vmem:[%s214 + $0xd0] sm:$0xff]
        %v258 = vld [vmem:[%s214 + $0xd8] sm:$0xff]
        %v259 = vld [vmem:[%s214 + $0xe0] sm:$0xff]
        %v260 = vld [vmem:[%s214 + $0xe8] sm:$0xff]
        %v261 = vld [vmem:[%s214 + $0xf0] sm:$0xff]
        %v262 = vld [vmem:[%s214 + $0xf8] sm:$0xff]
        %vm263 = vcmp.ge.s32.totalorder %v231, 0
        %vm264 = vcmp.ge.s32.totalorder %v232, 0
        %vm265 = vcmp.ge.s32.totalorder %v233, 0
        %vm266 = vcmp.ge.s32.totalorder %v234, 0
        %vm267 = vcmp.ge.s32.totalorder %v235, 0
        %vm268 = vcmp.ge.s32.totalorder %v236, 0
        %vm269 = vcmp.ge.s32.totalorder %v237, 0
        %vm270 = vcmp.ge.s32.totalorder %v238, 0
        %vm271 = vcmp.ge.s32.totalorder %v239, 0
        %vm272 = vcmp.ge.s32.totalorder %v240, 0
        %vm273 = vcmp.ge.s32.totalorder %v241, 0
        %vm274 = vcmp.ge.s32.totalorder %v242, 0
        %vm275 = vcmp.ge.s32.totalorder %v243, 0
        %vm276 = vcmp.ge.s32.totalorder %v244, 0
        %vm277 = vcmp.ge.s32.totalorder %v245, 0
        %vm278 = vcmp.ge.s32.totalorder %v246, 0
        %vm279 = vcmp.ge.s32.totalorder %v247, 0
        %vm280 = vcmp.ge.s32.totalorder %v248, 0
        %vm281 = vcmp.ge.s32.totalorder %v249, 0
        %vm282 = vcmp.ge.s32.totalorder %v250, 0
        %vm283 = vcmp.ge.s32.totalorder %v251, 0
        %vm284 = vcmp.ge.s32.totalorder %v252, 0
        %vm285 = vcmp.ge.s32.totalorder %v253, 0
        %vm286 = vcmp.ge.s32.totalorder %v254, 0
        %vm287 = vcmp.ge.s32.totalorder %v255, 0
        %vm288 = vcmp.ge.s32.totalorder %v256, 0
        %vm289 = vcmp.ge.s32.totalorder %v257, 0
        %vm290 = vcmp.ge.s32.totalorder %v258, 0
        %vm291 = vcmp.ge.s32.totalorder %v259, 0
        %vm292 = vcmp.ge.s32.totalorder %v260, 0
        %vm293 = vcmp.ge.s32.totalorder %v261, 0
        %vm294 = vcmp.ge.s32.totalorder %v262, 0
        %v295 = vlaneseq
        %v296 = vand.u32 %v295, 127
        %v297 = vadd.s32 %v296, 128
        %298 = vset.pattern.permute.xlu0 0
        %299 = vperm.xlu0 %298, %v231
        %v300 = vpop.permute.xlu0 %299
        %301 = vset.pattern.permute.xlu0 0
        %302 = vperm.xlu0 %301, %v232
        %v303 = vpop.permute.xlu0 %302
        %304 = vset.pattern.permute.xlu0 0
        %305 = vperm.xlu0 %304, %v233
        %v306 = vpop.permute.xlu0 %305
        %307 = vset.pattern.permute.xlu0 0
        %308 = vperm.xlu0 %307, %v234
        %v309 = vpop.permute.xlu0 %308
        %310 = vset.pattern.permute.xlu0 0
        %311 = vperm.xlu0 %310, %v235
        %v312 = vpop.permute.xlu0 %311
        %313 = vset.pattern.permute.xlu0 0
        %314 = vperm.xlu0 %313, %v236
        %v315 = vpop.permute.xlu0 %314
        %316 = vset.pattern.permute.xlu0 0
        %317 = vperm.xlu0 %316, %v237
        %v318 = vpop.permute.xlu0 %317
        %319 = vset.pattern.permute.xlu0 0
        %320 = vperm.xlu0 %319, %v238
        %v321 = vpop.permute.xlu0 %320
        %322 = vset.pattern.permute.xlu0 0
        %323 = vperm.xlu0 %322, %v239
        %v324 = vpop.permute.xlu0 %323
        %325 = vset.pattern.permute.xlu0 0
        %326 = vperm.xlu0 %325, %v240
        %v327 = vpop.permute.xlu0 %326
        %328 = vset.pattern.permute.xlu0 0
        %329 = vperm.xlu0 %328, %v241
        %v330 = vpop.permute.xlu0 %329
        %331 = vset.pattern.permute.xlu0 0
        %332 = vperm.xlu0 %331, %v242
        %v333 = vpop.permute.xlu0 %332
        %334 = vset.pattern.permute.xlu0 0
        %335 = vperm.xlu0 %334, %v243
        %v336 = vpop.permute.xlu0 %335
        %337 = vset.pattern.permute.xlu0 0
        %338 = vperm.xlu0 %337, %v244
        %v339 = vpop.permute.xlu0 %338
        %340 = vset.pattern.permute.xlu0 0
        %341 = vperm.xlu0 %340, %v245
        %v342 = vpop.permute.xlu0 %341
        %343 = vset.pattern.permute.xlu0 0
        %344 = vperm.xlu0 %343, %v246
        %v345 = vpop.permute.xlu0 %344
        %346 = vset.pattern.permute.xlu0 0
        %347 = vperm.xlu0 %346, %v247
        %v348 = vpop.permute.xlu0 %347
        %349 = vset.pattern.permute.xlu0 0
        %350 = vperm.xlu0 %349, %v248
        %v351 = vpop.permute.xlu0 %350
        %352 = vset.pattern.permute.xlu0 0
        %353 = vperm.xlu0 %352, %v249
        %v354 = vpop.permute.xlu0 %353
        %355 = vset.pattern.permute.xlu0 0
        %356 = vperm.xlu0 %355, %v250
        %v357 = vpop.permute.xlu0 %356
        %358 = vset.pattern.permute.xlu0 0
        %359 = vperm.xlu0 %358, %v251
        %v360 = vpop.permute.xlu0 %359
        %361 = vset.pattern.permute.xlu0 0
        %362 = vperm.xlu0 %361, %v252
        %v363 = vpop.permute.xlu0 %362
        %364 = vset.pattern.permute.xlu0 0
        %365 = vperm.xlu0 %364, %v253
        %v366 = vpop.permute.xlu0 %365
        %367 = vset.pattern.permute.xlu0 0
        %368 = vperm.xlu0 %367, %v254
        %v369 = vpop.permute.xlu0 %368
        %370 = vset.pattern.permute.xlu0 0
        %371 = vperm.xlu0 %370, %v255
        %v372 = vpop.permute.xlu0 %371
        %373 = vset.pattern.permute.xlu0 0
        %374 = vperm.xlu0 %373, %v256
        %v375 = vpop.permute.xlu0 %374
        %376 = vset.pattern.permute.xlu0 0
        %377 = vperm.xlu0 %376, %v257
        %v378 = vpop.permute.xlu0 %377
        %379 = vset.pattern.permute.xlu0 0
        %380 = vperm.xlu0 %379, %v258
        %v381 = vpop.permute.xlu0 %380
        %382 = vset.pattern.permute.xlu0 0
        %383 = vperm.xlu0 %382, %v259
        %v384 = vpop.permute.xlu0 %383
        %385 = vset.pattern.permute.xlu0 0
        %386 = vperm.xlu0 %385, %v260
        %v387 = vpop.permute.xlu0 %386
        %388 = vset.pattern.permute.xlu0 0
        %389 = vperm.xlu0 %388, %v261
        %v390 = vpop.permute.xlu0 %389
        %391 = vset.pattern.permute.xlu0 0
        %392 = vperm.xlu0 %391, %v262
        %v393 = vpop.permute.xlu0 %392
        %vm394 = vcmp.eq.s32.totalorder %v296, %v300
        %vm395 = vcmp.eq.s32.totalorder %v297, %v300
        %vm396 = vcmp.eq.s32.totalorder %v296, %v303
        %vm397 = vcmp.eq.s32.totalorder %v297, %v303
        %vm398 = vcmp.eq.s32.totalorder %v296, %v306
        %vm399 = vcmp.eq.s32.totalorder %v297, %v306
        %vm400 = vcmp.eq.s32.totalorder %v296, %v309
        %vm401 = vcmp.eq.s32.totalorder %v297, %v309
        %vm402 = vcmp.eq.s32.totalorder %v296, %v312
        %vm403 = vcmp.eq.s32.totalorder %v297, %v312
        %vm404 = vcmp.eq.s32.totalorder %v296, %v315
        %vm405 = vcmp.eq.s32.totalorder %v297, %v315
        %vm406 = vcmp.eq.s32.totalorder %v296, %v318
        %vm407 = vcmp.eq.s32.totalorder %v297, %v318
        %vm408 = vcmp.eq.s32.totalorder %v296, %v321
        %vm409 = vcmp.eq.s32.totalorder %v297, %v321
        %vm410 = vcmp.eq.s32.totalorder %v296, %v324
        %vm411 = vcmp.eq.s32.totalorder %v297, %v324
        %vm412 = vcmp.eq.s32.totalorder %v296, %v327
        %vm413 = vcmp.eq.s32.totalorder %v297, %v327
        %vm414 = vcmp.eq.s32.totalorder %v296, %v330
        %vm415 = vcmp.eq.s32.totalorder %v297, %v330
        %vm416 = vcmp.eq.s32.totalorder %v296, %v333
        %vm417 = vcmp.eq.s32.totalorder %v297, %v333
        %vm418 = vcmp.eq.s32.totalorder %v296, %v336
        %vm419 = vcmp.eq.s32.totalorder %v297, %v336
        %vm420 = vcmp.eq.s32.totalorder %v296, %v339
        %vm421 = vcmp.eq.s32.totalorder %v297, %v339
        %vm422 = vcmp.eq.s32.totalorder %v296, %v342
        %vm423 = vcmp.eq.s32.totalorder %v297, %v342
        %vm424 = vcmp.eq.s32.totalorder %v296, %v345
        %vm425 = vcmp.eq.s32.totalorder %v297, %v345
        %vm426 = vcmp.eq.s32.totalorder %v296, %v348
        %vm427 = vcmp.eq.s32.totalorder %v297, %v348
        %vm428 = vcmp.eq.s32.totalorder %v296, %v351
        %vm429 = vcmp.eq.s32.totalorder %v297, %v351
        %vm430 = vcmp.eq.s32.totalorder %v296, %v354
        %vm431 = vcmp.eq.s32.totalorder %v297, %v354
        %vm432 = vcmp.eq.s32.totalorder %v296, %v357
        %vm433 = vcmp.eq.s32.totalorder %v297, %v357
        %vm434 = vcmp.eq.s32.totalorder %v296, %v360
        %vm435 = vcmp.eq.s32.totalorder %v297, %v360
        %vm436 = vcmp.eq.s32.totalorder %v296, %v363
        %vm437 = vcmp.eq.s32.totalorder %v297, %v363
        %vm438 = vcmp.eq.s32.totalorder %v296, %v366
        %vm439 = vcmp.eq.s32.totalorder %v297, %v366
        %vm440 = vcmp.eq.s32.totalorder %v296, %v369
        %vm441 = vcmp.eq.s32.totalorder %v297, %v369
        %vm442 = vcmp.eq.s32.totalorder %v296, %v372
        %vm443 = vcmp.eq.s32.totalorder %v297, %v372
        %vm444 = vcmp.eq.s32.totalorder %v296, %v375
        %vm445 = vcmp.eq.s32.totalorder %v297, %v375
        %vm446 = vcmp.eq.s32.totalorder %v296, %v378
        %vm447 = vcmp.eq.s32.totalorder %v297, %v378
        %vm448 = vcmp.eq.s32.totalorder %v296, %v381
        %vm449 = vcmp.eq.s32.totalorder %v297, %v381
        %vm450 = vcmp.eq.s32.totalorder %v296, %v384
        %vm451 = vcmp.eq.s32.totalorder %v297, %v384
        %vm452 = vcmp.eq.s32.totalorder %v296, %v387
        %vm453 = vcmp.eq.s32.totalorder %v297, %v387
        %vm454 = vcmp.eq.s32.totalorder %v296, %v390
        %vm455 = vcmp.eq.s32.totalorder %v297, %v390
        %vm456 = vcmp.eq.s32.totalorder %v296, %v393
        %vm457 = vcmp.eq.s32.totalorder %v297, %v393
        %v458 = vsel %vm394, 1, 0
        %v459 = vsel %vm395, 1, 0
        %v460 = vsel %vm396, 1, 0
        %v461 = vsel %vm397, 1, 0
        %v462 = vsel %vm398, 1, 0
        %v463 = vsel %vm399, 1, 0
        %v464 = vsel %vm400, 1, 0
        %v465 = vsel %vm401, 1, 0
        %v466 = vsel %vm402, 1, 0
        %v467 = vsel %vm403, 1, 0
        %v468 = vsel %vm404, 1, 0
        %v469 = vsel %vm405, 1, 0
        %v470 = vsel %vm406, 1, 0
        %v471 = vsel %vm407, 1, 0
        %v472 = vsel %vm408, 1, 0
        %v473 = vsel %vm409, 1, 0
        %v474 = vsel %vm410, 1, 0
        %v475 = vsel %vm411, 1, 0
        %v476 = vsel %vm412, 1, 0
        %v477 = vsel %vm413, 1, 0
        %v478 = vsel %vm414, 1, 0
        %v479 = vsel %vm415, 1, 0
        %v480 = vsel %vm416, 1, 0
        %v481 = vsel %vm417, 1, 0
        %v482 = vsel %vm418, 1, 0
        %v483 = vsel %vm419, 1, 0
        %v484 = vsel %vm420, 1, 0
        %v485 = vsel %vm421, 1, 0
        %v486 = vsel %vm422, 1, 0
        %v487 = vsel %vm423, 1, 0
        %v488 = vsel %vm424, 1, 0
        %v489 = vsel %vm425, 1, 0
        %v490 = vsel %vm426, 1, 0
        %v491 = vsel %vm427, 1, 0
        %v492 = vsel %vm428, 1, 0
        %v493 = vsel %vm429, 1, 0
        %v494 = vsel %vm430, 1, 0
        %v495 = vsel %vm431, 1, 0
        %v496 = vsel %vm432, 1, 0
        %v497 = vsel %vm433, 1, 0
        %v498 = vsel %vm434, 1, 0
        %v499 = vsel %vm435, 1, 0
        %v500 = vsel %vm436, 1, 0
        %v501 = vsel %vm437, 1, 0
        %v502 = vsel %vm438, 1, 0
        %v503 = vsel %vm439, 1, 0
        %v504 = vsel %vm440, 1, 0
        %v505 = vsel %vm441, 1, 0
        %v506 = vsel %vm442, 1, 0
        %v507 = vsel %vm443, 1, 0
        %v508 = vsel %vm444, 1, 0
        %v509 = vsel %vm445, 1, 0
        %v510 = vsel %vm446, 1, 0
        %v511 = vsel %vm447, 1, 0
        %v512 = vsel %vm448, 1, 0
        %v513 = vsel %vm449, 1, 0
        %v514 = vsel %vm450, 1, 0
        %v515 = vsel %vm451, 1, 0
        %v516 = vsel %vm452, 1, 0
        %v517 = vsel %vm453, 1, 0
        %v518 = vsel %vm454, 1, 0
        %v519 = vsel %vm455, 1, 0
        %v520 = vsel %vm456, 1, 0
        %v521 = vsel %vm457, 1, 0
        %v522 = vcvt.s32.f32 %v458
        %v523 = vcvt.s32.f32 %v459
        %v524 = vcvt.s32.f32 %v460
        %v525 = vcvt.s32.f32 %v461
        %v526 = vcvt.s32.f32 %v462
        %v527 = vcvt.s32.f32 %v463
        %v528 = vcvt.s32.f32 %v464
        %v529 = vcvt.s32.f32 %v465
        %v530 = vcvt.s32.f32 %v466
        %v531 = vcvt.s32.f32 %v467
        %v532 = vcvt.s32.f32 %v468
        %v533 = vcvt.s32.f32 %v469
        %v534 = vcvt.s32.f32 %v470
        %v535 = vcvt.s32.f32 %v471
        %v536 = vcvt.s32.f32 %v472
        %v537 = vcvt.s32.f32 %v473
        %v538 = vcvt.s32.f32 %v474
        %v539 = vcvt.s32.f32 %v475
        %v540 = vcvt.s32.f32 %v476
        %v541 = vcvt.s32.f32 %v477
        %v542 = vcvt.s32.f32 %v478
        %v543 = vcvt.s32.f32 %v479
        %v544 = vcvt.s32.f32 %v480
        %v545 = vcvt.s32.f32 %v481
        %v546 = vcvt.s32.f32 %v482
        %v547 = vcvt.s32.f32 %v483
        %v548 = vcvt.s32.f32 %v484
        %v549 = vcvt.s32.f32 %v485
        %v550 = vcvt.s32.f32 %v486
        %v551 = vcvt.s32.f32 %v487
        %v552 = vcvt.s32.f32 %v488
        %v553 = vcvt.s32.f32 %v489
        %v554 = vcvt.s32.f32 %v490
        %v555 = vcvt.s32.f32 %v491
        %v556 = vcvt.s32.f32 %v492
        %v557 = vcvt.s32.f32 %v493
        %v558 = vcvt.s32.f32 %v494
        %v559 = vcvt.s32.f32 %v495
        %v560 = vcvt.s32.f32 %v496
        %v561 = vcvt.s32.f32 %v497
        %v562 = vcvt.s32.f32 %v498
        %v563 = vcvt.s32.f32 %v499
        %v564 = vcvt.s32.f32 %v500
        %v565 = vcvt.s32.f32 %v501
        %v566 = vcvt.s32.f32 %v502
        %v567 = vcvt.s32.f32 %v503
        %v568 = vcvt.s32.f32 %v504
        %v569 = vcvt.s32.f32 %v505
        %v570 = vcvt.s32.f32 %v506
        %v571 = vcvt.s32.f32 %v507
        %v572 = vcvt.s32.f32 %v508
        %v573 = vcvt.s32.f32 %v509
        %v574 = vcvt.s32.f32 %v510
        %v575 = vcvt.s32.f32 %v511
        %v576 = vcvt.s32.f32 %v512
        %v577 = vcvt.s32.f32 %v513
        %v578 = vcvt.s32.f32 %v514
        %v579 = vcvt.s32.f32 %v515
        %v580 = vcvt.s32.f32 %v516
        %v581 = vcvt.s32.f32 %v517
        %v582 = vcvt.s32.f32 %v518
        %v583 = vcvt.s32.f32 %v519
        %v584 = vcvt.s32.f32 %v520
        %v585 = vcvt.s32.f32 %v521
        %v586 = vld [vmem:[#allocation2] sm:$0xff]
        %v587 = vld [vmem:[#allocation2 + $0x8] sm:$0xff]
        %v588 = vld [vmem:[#allocation2 + $0x10] sm:$0xff]
        %v589 = vld [vmem:[#allocation2 + $0x18] sm:$0xff]
        %v590 = vld [vmem:[#allocation2 + $0x20] sm:$0xff]
        %v591 = vld [vmem:[#allocation2 + $0x28] sm:$0xff]
        %v592 = vld [vmem:[#allocation2 + $0x30] sm:$0xff]
        %v593 = vld [vmem:[#allocation2 + $0x38] sm:$0xff]
        %v594 = vld [vmem:[#allocation2 + $0x40] sm:$0xff]
        %v595 = vld [vmem:[#allocation2 + $0x48] sm:$0xff]
        %v596 = vld [vmem:[#allocation2 + $0x50] sm:$0xff]
        %v597 = vld [vmem:[#allocation2 + $0x58] sm:$0xff]
        %v598 = vld [vmem:[#allocation2 + $0x60] sm:$0xff]
        %v599 = vld [vmem:[#allocation2 + $0x68] sm:$0xff]
        %v600 = vld [vmem:[#allocation2 + $0x70] sm:$0xff]
        %v601 = vld [vmem:[#allocation2 + $0x78] sm:$0xff]
        %v602 = vld [vmem:[#allocation2 + $0x80] sm:$0xff]
        %v603 = vld [vmem:[#allocation2 + $0x88] sm:$0xff]
        %v604 = vld [vmem:[#allocation2 + $0x90] sm:$0xff]
        %v605 = vld [vmem:[#allocation2 + $0x98] sm:$0xff]
        %v606 = vld [vmem:[#allocation2 + $0xa0] sm:$0xff]
        %v607 = vld [vmem:[#allocation2 + $0xa8] sm:$0xff]
        %v608 = vld [vmem:[#allocation2 + $0xb0] sm:$0xff]
        %v609 = vld [vmem:[#allocation2 + $0xb8] sm:$0xff]
        %v610 = vld [vmem:[#allocation2 + $0xc0] sm:$0xff]
        %v611 = vld [vmem:[#allocation2 + $0xc8] sm:$0xff]
        %v612 = vld [vmem:[#allocation2 + $0xd0] sm:$0xff]
        %v613 = vld [vmem:[#allocation2 + $0xd8] sm:$0xff]
        %v614 = vld [vmem:[#allocation2 + $0xe0] sm:$0xff]
        %v615 = vld [vmem:[#allocation2 + $0xe8] sm:$0xff]
        %v616 = vld [vmem:[#allocation2 + $0xf0] sm:$0xff]
        %v617 = vld [vmem:[#allocation2 + $0xf8] sm:$0xff]
        %v618 = vld [vmem:[%s224] sm:$0xff]
        %v619 = vld [vmem:[%s224 + $0x8] sm:$0xff]
        %v620 = vld [vmem:[%s224 + $0x10] sm:$0xff]
        %v621 = vld [vmem:[%s224 + $0x18] sm:$0xff]
        %v622 = vld [vmem:[%s224 + $0x20] sm:$0xff]
        %v623 = vld [vmem:[%s224 + $0x28] sm:$0xff]
        %v624 = vld [vmem:[%s224 + $0x30] sm:$0xff]
        %v625 = vld [vmem:[%s224 + $0x38] sm:$0xff]
        %v626 = vld [vmem:[%s224 + $0x40] sm:$0xff]
        %v627 = vld [vmem:[%s224 + $0x48] sm:$0xff]
        %v628 = vld [vmem:[%s224 + $0x50] sm:$0xff]
        %v629 = vld [vmem:[%s224 + $0x58] sm:$0xff]
        %v630 = vld [vmem:[%s224 + $0x60] sm:$0xff]
        %v631 = vld [vmem:[%s224 + $0x68] sm:$0xff]
        %v632 = vld [vmem:[%s224 + $0x70] sm:$0xff]
        %v633 = vld [vmem:[%s224 + $0x78] sm:$0xff]
        %v634 = vld [vmem:[%s224 + $0x80] sm:$0xff]
        %v635 = vld [vmem:[%s224 + $0x88] sm:$0xff]
        %v636 = vld [vmem:[%s224 + $0x90] sm:$0xff]
        %v637 = vld [vmem:[%s224 + $0x98] sm:$0xff]
        %v638 = vld [vmem:[%s224 + $0xa0] sm:$0xff]
        %v639 = vld [vmem:[%s224 + $0xa8] sm:$0xff]
        %v640 = vld [vmem:[%s224 + $0xb0] sm:$0xff]
        %v641 = vld [vmem:[%s224 + $0xb8] sm:$0xff]
        %v642 = vld [vmem:[%s224 + $0xc0] sm:$0xff]
        %v643 = vld [vmem:[%s224 + $0xc8] sm:$0xff]
        %v644 = vld [vmem:[%s224 + $0xd0] sm:$0xff]
        %v645 = vld [vmem:[%s224 + $0xd8] sm:$0xff]
        %v646 = vld [vmem:[%s224 + $0xe0] sm:$0xff]
        %v647 = vld [vmem:[%s224 + $0xe8] sm:$0xff]
        %v648 = vld [vmem:[%s224 + $0xf0] sm:$0xff]
        %v649 = vld [vmem:[%s224 + $0xf8] sm:$0xff]
        %650 = vmatpush.msra.mxu0 %v601
        %651 = vmatpush.msra.mxu0 %v600
        %652 = vmatpush.msra.mxu0 %v599
        %653 = vmatpush.msra.mxu0 %v598
        %654 = vmatpush.msra.mxu0 %v597
        %655 = vmatpush.msra.mxu0 %v596
        %656 = vmatpush.msra.mxu0 %v595
        %657 = vmatpush.msra.mxu0 %v594
        %658 = vmatpush.msra.mxu0 %v593
        %659 = vmatpush.msra.mxu0 %v592
        %660 = vmatpush.msra.mxu0 %v591
        %661 = vmatpush.msra.mxu0 %v590
        %662 = vmatpush.msra.mxu0 %v589
        %663 = vmatpush.msra.mxu0 %v588
        %664 = vmatpush.msra.mxu0 %v587
        %665 = vmatpush.msra.mxu0 %v586
        %666 = vmatmul.f32.gmra.mxu0 %v522
        %v667 = vpop.f32.mrf.mxu0
        %v668 = vadd.f32 %v618, %v667
        %669 = vmatmul.f32.gmra.mxu0 %v524
        %v670 = vpop.f32.mrf.mxu0
        %v671 = vadd.f32 %v619, %v670
        %672 = vmatmul.f32.gmra.mxu0 %v526
        %v673 = vpop.f32.mrf.mxu0
        %v674 = vadd.f32 %v620, %v673
        %675 = vmatmul.f32.gmra.mxu0 %v528
        %v676 = vpop.f32.mrf.mxu0
        %v677 = vadd.f32 %v621, %v676
        %678 = vmatmul.f32.gmra.mxu0 %v530
        %v679 = vpop.f32.mrf.mxu0
        %v680 = vadd.f32 %v622, %v679
        %681 = vmatmul.f32.gmra.mxu0 %v532
        %v682 = vpop.f32.mrf.mxu0
        %v683 = vadd.f32 %v623, %v682
        %684 = vmatmul.f32.gmra.mxu0 %v534
        %v685 = vpop.f32.mrf.mxu0
        %v686 = vadd.f32 %v624, %v685
        %687 = vmatmul.f32.gmra.mxu0 %v536
        %v688 = vpop.f32.mrf.mxu0
        %v689 = vadd.f32 %v625, %v688
        %690 = vmatmul.f32.gmra.mxu0 %v538
        %v691 = vpop.f32.mrf.mxu0
        %v692 = vadd.f32 %v626, %v691
        %693 = vmatmul.f32.gmra.mxu0 %v540
        %v694 = vpop.f32.mrf.mxu0
        %v695 = vadd.f32 %v627, %v694
        %696 = vmatmul.f32.gmra.mxu0 %v542
        %v697 = vpop.f32.mrf.mxu0
        %v698 = vadd.f32 %v628, %v697
        %699 = vmatmul.f32.gmra.mxu0 %v544
        %v700 = vpop.f32.mrf.mxu0
        %v701 = vadd.f32 %v629, %v700
        %702 = vmatmul.f32.gmra.mxu0 %v546
        %v703 = vpop.f32.mrf.mxu0
        %v704 = vadd.f32 %v630, %v703
        %705 = vmatmul.f32.gmra.mxu0 %v548
        %v706 = vpop.f32.mrf.mxu0
        %v707 = vadd.f32 %v631, %v706
        %708 = vmatmul.f32.gmra.mxu0 %v550
        %v709 = vpop.f32.mrf.mxu0
        %v710 = vadd.f32 %v632, %v709
        %711 = vmatmul.f32.gmra.mxu0 %v552
        %v712 = vpop.f32.mrf.mxu0
        %v713 = vadd.f32 %v633, %v712
        %714 = vmatmul.f32.gmra.mxu0 %v554
        %v715 = vpop.f32.mrf.mxu0
        %v716 = vadd.f32 %v634, %v715
        %717 = vmatmul.f32.gmra.mxu0 %v556
        %v718 = vpop.f32.mrf.mxu0
        %v719 = vadd.f32 %v635, %v718
        %720 = vmatmul.f32.gmra.mxu0 %v558
        %v721 = vpop.f32.mrf.mxu0
        %v722 = vadd.f32 %v636, %v721
        %723 = vmatmul.f32.gmra.mxu0 %v560
        %v724 = vpop.f32.mrf.mxu0
        %v725 = vadd.f32 %v637, %v724
        %726 = vmatmul.f32.gmra.mxu0 %v562
        %v727 = vpop.f32.mrf.mxu0
        %v728 = vadd.f32 %v638, %v727
        %729 = vmatmul.f32.gmra.mxu0 %v564
        %v730 = vpop.f32.mrf.mxu0
        %v731 = vadd.f32 %v639, %v730
        %732 = vmatmul.f32.gmra.mxu0 %v566
        %v733 = vpop.f32.mrf.mxu0
        %v734 = vadd.f32 %v640, %v733
        %735 = vmatmul.f32.gmra.mxu0 %v568
        %v736 = vpop.f32.mrf.mxu0
        %v737 = vadd.f32 %v641, %v736
        %738 = vmatmul.f32.gmra.mxu0 %v570
        %v739 = vpop.f32.mrf.mxu0
        %v740 = vadd.f32 %v642, %v739
        %741 = vmatmul.f32.gmra.mxu0 %v572
        %v742 = vpop.f32.mrf.mxu0
        %v743 = vadd.f32 %v643, %v742
        %744 = vmatmul.f32.gmra.mxu0 %v574
        %v745 = vpop.f32.mrf.mxu0
        %v746 = vadd.f32 %v644, %v745
        %747 = vmatmul.f32.gmra.mxu0 %v576
        %v748 = vpop.f32.mrf.mxu0
        %v749 = vadd.f32 %v645, %v748
        %750 = vmatmul.f32.gmra.mxu0 %v578
        %v751 = vpop.f32.mrf.mxu0
        %v752 = vadd.f32 %v646, %v751
        %753 = vmatmul.f32.gmra.mxu0 %v580
        %v754 = vpop.f32.mrf.mxu0
        %v755 = vadd.f32 %v647, %v754
        %756 = vmatmul.f32.gmra.mxu0 %v582
        %v757 = vpop.f32.mrf.mxu0
        %v758 = vadd.f32 %v648, %v757
        %759 = vmatmul.f32.gmra.mxu0 %v584
        %v760 = vpop.f32.mrf.mxu0
        %v761 = vadd.f32 %v649, %v760
        %762 = vdwg.mxu0
        %763 = vmatpush.msra.mxu0 %v617
        %764 = vmatpush.msra.mxu0 %v616
        %765 = vmatpush.msra.mxu0 %v615
        %766 = vmatpush.msra.mxu0 %v614
        %767 = vmatpush.msra.mxu0 %v613
        %768 = vmatpush.msra.mxu0 %v612
        %769 = vmatpush.msra.mxu0 %v611
        %770 = vmatpush.msra.mxu0 %v610
        %771 = vmatpush.msra.mxu0 %v609
        %772 = vmatpush.msra.mxu0 %v608
        %773 = vmatpush.msra.mxu0 %v607
        %774 = vmatpush.msra.mxu0 %v606
        %775 = vmatpush.msra.mxu0 %v605
        %776 = vmatpush.msra.mxu0 %v604
        %777 = vmatpush.msra.mxu0 %v603
        %778 = vmatpush.msra.mxu0 %v602
        %779 = vmatmul.f32.gmra.mxu0 %v523
        %v780 = vpop.f32.mrf.mxu0
        %v781 = vadd.f32 %v668, %v780
        %782 = vmatmul.f32.gmra.mxu0 %v525
        %v783 = vpop.f32.mrf.mxu0
        %v784 = vadd.f32 %v671, %v783
        %785 = vmatmul.f32.gmra.mxu0 %v527
        %v786 = vpop.f32.mrf.mxu0
        %v787 = vadd.f32 %v674, %v786
        %788 = vmatmul.f32.gmra.mxu0 %v529
        %v789 = vpop.f32.mrf.mxu0
        %v790 = vadd.f32 %v677, %v789
        %791 = vmatmul.f32.gmra.mxu0 %v531
        %v792 = vpop.f32.mrf.mxu0
        %v793 = vadd.f32 %v680, %v792
        %794 = vmatmul.f32.gmra.mxu0 %v533
        %v795 = vpop.f32.mrf.mxu0
        %v796 = vadd.f32 %v683, %v795
        %797 = vmatmul.f32.gmra.mxu0 %v535
        %v798 = vpop.f32.mrf.mxu0
        %v799 = vadd.f32 %v686, %v798
        %800 = vmatmul.f32.gmra.mxu0 %v537
        %v801 = vpop.f32.mrf.mxu0
        %v802 = vadd.f32 %v689, %v801
        %803 = vmatmul.f32.gmra.mxu0 %v539
        %v804 = vpop.f32.mrf.mxu0
        %v805 = vadd.f32 %v692, %v804
        %806 = vmatmul.f32.gmra.mxu0 %v541
        %v807 = vpop.f32.mrf.mxu0
        %v808 = vadd.f32 %v695, %v807
        %809 = vmatmul.f32.gmra.mxu0 %v543
        %v810 = vpop.f32.mrf.mxu0
        %v811 = vadd.f32 %v698, %v810
        %812 = vmatmul.f32.gmra.mxu0 %v545
        %v813 = vpop.f32.mrf.mxu0
        %v814 = vadd.f32 %v701, %v813
        %815 = vmatmul.f32.gmra.mxu0 %v547
        %v816 = vpop.f32.mrf.mxu0
        %v817 = vadd.f32 %v704, %v816
        %818 = vmatmul.f32.gmra.mxu0 %v549
        %v819 = vpop.f32.mrf.mxu0
        %v820 = vadd.f32 %v707, %v819
        %821 = vmatmul.f32.gmra.mxu0 %v551
        %v822 = vpop.f32.mrf.mxu0
        %v823 = vadd.f32 %v710, %v822
        %824 = vmatmul.f32.gmra.mxu0 %v553
        %v825 = vpop.f32.mrf.mxu0
        %v826 = vadd.f32 %v713, %v825
        %827 = vmatmul.f32.gmra.mxu0 %v555
        %v828 = vpop.f32.mrf.mxu0
        %v829 = vadd.f32 %v716, %v828
        %830 = vmatmul.f32.gmra.mxu0 %v557
        %v831 = vpop.f32.mrf.mxu0
        %v832 = vadd.f32 %v719, %v831
        %833 = vmatmul.f32.gmra.mxu0 %v559
        %v834 = vpop.f32.mrf.mxu0
        %v835 = vadd.f32 %v722, %v834
        %836 = vmatmul.f32.gmra.mxu0 %v561
        %v837 = vpop.f32.mrf.mxu0
        %v838 = vadd.f32 %v725, %v837
        %839 = vmatmul.f32.gmra.mxu0 %v563
        %v840 = vpop.f32.mrf.mxu0
        %v841 = vadd.f32 %v728, %v840
        %842 = vmatmul.f32.gmra.mxu0 %v565
        %v843 = vpop.f32.mrf.mxu0
        %v844 = vadd.f32 %v731, %v843
        %845 = vmatmul.f32.gmra.mxu0 %v567
        %v846 = vpop.f32.mrf.mxu0
        %v847 = vadd.f32 %v734, %v846
        %848 = vmatmul.f32.gmra.mxu0 %v569
        %v849 = vpop.f32.mrf.mxu0
        %v850 = vadd.f32 %v737, %v849
        %851 = vmatmul.f32.gmra.mxu0 %v571
        %v852 = vpop.f32.mrf.mxu0
        %v853 = vadd.f32 %v740, %v852
        %854 = vmatmul.f32.gmra.mxu0 %v573
        %v855 = vpop.f32.mrf.mxu0
        %v856 = vadd.f32 %v743, %v855
        %857 = vmatmul.f32.gmra.mxu0 %v575
        %v858 = vpop.f32.mrf.mxu0
        %v859 = vadd.f32 %v746, %v858
        %860 = vmatmul.f32.gmra.mxu0 %v577
        %v861 = vpop.f32.mrf.mxu0
        %v862 = vadd.f32 %v749, %v861
        %863 = vmatmul.f32.gmra.mxu0 %v579
        %v864 = vpop.f32.mrf.mxu0
        %v865 = vadd.f32 %v752, %v864
        %866 = vmatmul.f32.gmra.mxu0 %v581
        %v867 = vpop.f32.mrf.mxu0
        %v868 = vadd.f32 %v755, %v867
        %869 = vmatmul.f32.gmra.mxu0 %v583
        %v870 = vpop.f32.mrf.mxu0
        %v871 = vadd.f32 %v758, %v870
        %872 = vmatmul.f32.gmra.mxu0 %v585
        %v873 = vpop.f32.mrf.mxu0
        %v874 = vadd.f32 %v761, %v873
        %875 = vdwg.mxu0
        %v876 = vsel %vm263, 1, 0
        %v877 = vsel %vm264, 1, 0
        %v878 = vsel %vm265, 1, 0
        %v879 = vsel %vm266, 1, 0
        %v880 = vsel %vm267, 1, 0
        %v881 = vsel %vm268, 1, 0
        %v882 = vsel %vm269, 1, 0
        %v883 = vsel %vm270, 1, 0
        %v884 = vsel %vm271, 1, 0
        %v885 = vsel %vm272, 1, 0
        %v886 = vsel %vm273, 1, 0
        %v887 = vsel %vm274, 1, 0
        %v888 = vsel %vm275, 1, 0
        %v889 = vsel %vm276, 1, 0
        %v890 = vsel %vm277, 1, 0
        %v891 = vsel %vm278, 1, 0
        %v892 = vsel %vm279, 1, 0
        %v893 = vsel %vm280, 1, 0
        %v894 = vsel %vm281, 1, 0
        %v895 = vsel %vm282, 1, 0
        %v896 = vsel %vm283, 1, 0
        %v897 = vsel %vm284, 1, 0
        %v898 = vsel %vm285, 1, 0
        %v899 = vsel %vm286, 1, 0
        %v900 = vsel %vm287, 1, 0
        %v901 = vsel %vm288, 1, 0
        %v902 = vsel %vm289, 1, 0
        %v903 = vsel %vm290, 1, 0
        %v904 = vsel %vm291, 1, 0
        %v905 = vsel %vm292, 1, 0
        %v906 = vsel %vm293, 1, 0
        %v907 = vsel %vm294, 1, 0
        %908 = vset.pattern.permute.xlu0 0
        %909 = vperm.xlu0 %908, %v876
        %v910 = vpop.permute.xlu0 %909
        %911 = vset.pattern.permute.xlu0 0
        %912 = vperm.xlu0 %911, %v877
        %v913 = vpop.permute.xlu0 %912
        %914 = vset.pattern.permute.xlu0 0
        %915 = vperm.xlu0 %914, %v878
        %v916 = vpop.permute.xlu0 %915
        %917 = vset.pattern.permute.xlu0 0
        %918 = vperm.xlu0 %917, %v879
        %v919 = vpop.permute.xlu0 %918
        %920 = vset.pattern.permute.xlu0 0
        %921 = vperm.xlu0 %920, %v880
        %v922 = vpop.permute.xlu0 %921
        %923 = vset.pattern.permute.xlu0 0
        %924 = vperm.xlu0 %923, %v881
        %v925 = vpop.permute.xlu0 %924
        %926 = vset.pattern.permute.xlu0 0
        %927 = vperm.xlu0 %926, %v882
        %v928 = vpop.permute.xlu0 %927
        %929 = vset.pattern.permute.xlu0 0
        %930 = vperm.xlu0 %929, %v883
        %v931 = vpop.permute.xlu0 %930
        %932 = vset.pattern.permute.xlu0 0
        %933 = vperm.xlu0 %932, %v884
        %v934 = vpop.permute.xlu0 %933
        %935 = vset.pattern.permute.xlu0 0
        %936 = vperm.xlu0 %935, %v885
        %v937 = vpop.permute.xlu0 %936
        %938 = vset.pattern.permute.xlu0 0
        %939 = vperm.xlu0 %938, %v886
        %v940 = vpop.permute.xlu0 %939
        %941 = vset.pattern.permute.xlu0 0
        %942 = vperm.xlu0 %941, %v887
        %v943 = vpop.permute.xlu0 %942
        %944 = vset.pattern.permute.xlu0 0
        %945 = vperm.xlu0 %944, %v888
        %v946 = vpop.permute.xlu0 %945
        %947 = vset.pattern.permute.xlu0 0
        %948 = vperm.xlu0 %947, %v889
        %v949 = vpop.permute.xlu0 %948
        %950 = vset.pattern.permute.xlu0 0
        %951 = vperm.xlu0 %950, %v890
        %v952 = vpop.permute.xlu0 %951
        %953 = vset.pattern.permute.xlu0 0
        %954 = vperm.xlu0 %953, %v891
        %v955 = vpop.permute.xlu0 %954
        %956 = vset.pattern.permute.xlu0 0
        %957 = vperm.xlu0 %956, %v892
        %v958 = vpop.permute.xlu0 %957
        %959 = vset.pattern.permute.xlu0 0
        %960 = vperm.xlu0 %959, %v893
        %v961 = vpop.permute.xlu0 %960
        %962 = vset.pattern.permute.xlu0 0
        %963 = vperm.xlu0 %962, %v894
        %v964 = vpop.permute.xlu0 %963
        %965 = vset.pattern.permute.xlu0 0
        %966 = vperm.xlu0 %965, %v895
        %v967 = vpop.permute.xlu0 %966
        %968 = vset.pattern.permute.xlu0 0
        %969 = vperm.xlu0 %968, %v896
        %v970 = vpop.permute.xlu0 %969
        %971 = vset.pattern.permute.xlu0 0
        %972 = vperm.xlu0 %971, %v897
        %v973 = vpop.permute.xlu0 %972
        %974 = vset.pattern.permute.xlu0 0
        %975 = vperm.xlu0 %974, %v898
        %v976 = vpop.permute.xlu0 %975
        %977 = vset.pattern.permute.xlu0 0
        %978 = vperm.xlu0 %977, %v899
        %v979 = vpop.permute.xlu0 %978
        %980 = vset.pattern.permute.xlu0 0
        %981 = vperm.xlu0 %980, %v900
        %v982 = vpop.permute.xlu0 %981
        %983 = vset.pattern.permute.xlu0 0
        %984 = vperm.xlu0 %983, %v901
        %v985 = vpop.permute.xlu0 %984
        %986 = vset.pattern.permute.xlu0 0
        %987 = vperm.xlu0 %986, %v902
        %v988 = vpop.permute.xlu0 %987
        %989 = vset.pattern.permute.xlu0 0
        %990 = vperm.xlu0 %989, %v903
        %v991 = vpop.permute.xlu0 %990
        %992 = vset.pattern.permute.xlu0 0
        %993 = vperm.xlu0 %992, %v904
        %v994 = vpop.permute.xlu0 %993
        %995 = vset.pattern.permute.xlu0 0
        %996 = vperm.xlu0 %995, %v905
        %v997 = vpop.permute.xlu0 %996
        %998 = vset.pattern.permute.xlu0 0
        %999 = vperm.xlu0 %998, %v906
        %v1000 = vpop.permute.xlu0 %999
        %1001 = vset.pattern.permute.xlu0 0
        %1002 = vperm.xlu0 %1001, %v907
        %v1003 = vpop.permute.xlu0 %1002
        %vm1004 = vcmp.eq.s32.totalorder %v910, 1
        %vm1005 = vcmp.eq.s32.totalorder %v913, 1
        %vm1006 = vcmp.eq.s32.totalorder %v916, 1
        %vm1007 = vcmp.eq.s32.totalorder %v919, 1
        %vm1008 = vcmp.eq.s32.totalorder %v922, 1
        %vm1009 = vcmp.eq.s32.totalorder %v925, 1
        %vm1010 = vcmp.eq.s32.totalorder %v928, 1
        %vm1011 = vcmp.eq.s32.totalorder %v931, 1
        %vm1012 = vcmp.eq.s32.totalorder %v934, 1
        %vm1013 = vcmp.eq.s32.totalorder %v937, 1
        %vm1014 = vcmp.eq.s32.totalorder %v940, 1
        %vm1015 = vcmp.eq.s32.totalorder %v943, 1
        %vm1016 = vcmp.eq.s32.totalorder %v946, 1
        %vm1017 = vcmp.eq.s32.totalorder %v949, 1
        %vm1018 = vcmp.eq.s32.totalorder %v952, 1
        %vm1019 = vcmp.eq.s32.totalorder %v955, 1
        %vm1020 = vcmp.eq.s32.totalorder %v958, 1
        %vm1021 = vcmp.eq.s32.totalorder %v961, 1
        %vm1022 = vcmp.eq.s32.totalorder %v964, 1
        %vm1023 = vcmp.eq.s32.totalorder %v967, 1
        %vm1024 = vcmp.eq.s32.totalorder %v970, 1
        %vm1025 = vcmp.eq.s32.totalorder %v973, 1
        %vm1026 = vcmp.eq.s32.totalorder %v976, 1
        %vm1027 = vcmp.eq.s32.totalorder %v979, 1
        %vm1028 = vcmp.eq.s32.totalorder %v982, 1
        %vm1029 = vcmp.eq.s32.totalorder %v985, 1
        %vm1030 = vcmp.eq.s32.totalorder %v988, 1
        %vm1031 = vcmp.eq.s32.totalorder %v991, 1
        %vm1032 = vcmp.eq.s32.totalorder %v994, 1
        %vm1033 = vcmp.eq.s32.totalorder %v997, 1
        %vm1034 = vcmp.eq.s32.totalorder %v1000, 1
        %vm1035 = vcmp.eq.s32.totalorder %v1003, 1
        %v1036 = vsel %vm1004, %v781, 0.0
        %v1037 = vsel %vm1005, %v784, 0.0
        %v1038 = vsel %vm1006, %v787, 0.0
        %v1039 = vsel %vm1007, %v790, 0.0
        %v1040 = vsel %vm1008, %v793, 0.0
        %v1041 = vsel %vm1009, %v796, 0.0
        %v1042 = vsel %vm1010, %v799, 0.0
        %v1043 = vsel %vm1011, %v802, 0.0
        %v1044 = vsel %vm1012, %v805, 0.0
        %v1045 = vsel %vm1013, %v808, 0.0
        %v1046 = vsel %vm1014, %v811, 0.0
        %v1047 = vsel %vm1015, %v814, 0.0
        %v1048 = vsel %vm1016, %v817, 0.0
        %v1049 = vsel %vm1017, %v820, 0.0
        %v1050 = vsel %vm1018, %v823, 0.0
        %v1051 = vsel %vm1019, %v826, 0.0
        %v1052 = vsel %vm1020, %v829, 0.0
        %v1053 = vsel %vm1021, %v832, 0.0
        %v1054 = vsel %vm1022, %v835, 0.0
        %v1055 = vsel %vm1023, %v838, 0.0
        %v1056 = vsel %vm1024, %v841, 0.0
        %v1057 = vsel %vm1025, %v844, 0.0
        %v1058 = vsel %vm1026, %v847, 0.0
        %v1059 = vsel %vm1027, %v850, 0.0
        %v1060 = vsel %vm1028, %v853, 0.0
        %v1061 = vsel %vm1029, %v856, 0.0
        %v1062 = vsel %vm1030, %v859, 0.0
        %v1063 = vsel %vm1031, %v862, 0.0
        %v1064 = vsel %vm1032, %v865, 0.0
        %v1065 = vsel %vm1033, %v868, 0.0
        %v1066 = vsel %vm1034, %v871, 0.0
        %v1067 = vsel %vm1035, %v874, 0.0
        %1068 = vst [vmem:[%s209] sm:$0xff] %v1036
        %1069 = vst [vmem:[%s209 + $0x8] sm:$0xff] %v1037
        %1070 = vst [vmem:[%s209 + $0x10] sm:$0xff] %v1038
        %1071 = vst [vmem:[%s209 + $0x18] sm:$0xff] %v1039
        %1072 = vst [vmem:[%s209 + $0x20] sm:$0xff] %v1040
        %1073 = vst [vmem:[%s209 + $0x28] sm:$0xff] %v1041
        %1074 = vst [vmem:[%s209 + $0x30] sm:$0xff] %v1042
        %1075 = vst [vmem:[%s209 + $0x38] sm:$0xff] %v1043
        %1076 = vst [vmem:[%s209 + $0x40] sm:$0xff] %v1044
        %1077 = vst [vmem:[%s209 + $0x48] sm:$0xff] %v1045
        %1078 = vst [vmem:[%s209 + $0x50] sm:$0xff] %v1046
        %1079 = vst [vmem:[%s209 + $0x58] sm:$0xff] %v1047
        %1080 = vst [vmem:[%s209 + $0x60] sm:$0xff] %v1048
        %1081 = vst [vmem:[%s209 + $0x68] sm:$0xff] %v1049
        %1082 = vst [vmem:[%s209 + $0x70] sm:$0xff] %v1050
        %1083 = vst [vmem:[%s209 + $0x78] sm:$0xff] %v1051
        %1084 = vst [vmem:[%s209 + $0x80] sm:$0xff] %v1052
        %1085 = vst [vmem:[%s209 + $0x88] sm:$0xff] %v1053
        %1086 = vst [vmem:[%s209 + $0x90] sm:$0xff] %v1054
        %1087 = vst [vmem:[%s209 + $0x98] sm:$0xff] %v1055
        %1088 = vst [vmem:[%s209 + $0xa0] sm:$0xff] %v1056
        %1089 = vst [vmem:[%s209 + $0xa8] sm:$0xff] %v1057
        %1090 = vst [vmem:[%s209 + $0xb0] sm:$0xff] %v1058
        %1091 = vst [vmem:[%s209 + $0xb8] sm:$0xff] %v1059
        %1092 = vst [vmem:[%s209 + $0xc0] sm:$0xff] %v1060
        %1093 = vst [vmem:[%s209 + $0xc8] sm:$0xff] %v1061
        %1094 = vst [vmem:[%s209 + $0xd0] sm:$0xff] %v1062
        %1095 = vst [vmem:[%s209 + $0xd8] sm:$0xff] %v1063
        %1096 = vst [vmem:[%s209 + $0xe0] sm:$0xff] %v1064
        %1097 = vst [vmem:[%s209 + $0xe8] sm:$0xff] %v1065
        %1098 = vst [vmem:[%s209 + $0xf0] sm:$0xff] %v1066
        %1099 = vst [vmem:[%s209 + $0xf8] sm:$0xff] %v1067
        %s1100 = sand.u32 %s99, 1
        %s1101 = scalar_lea.sflag [#allocation4], %s1100
        %s1102 = sand.u32 %s99, 1
        %s1103 = smul.addr %s1102, 256
        %s1104 = scalar_lea.vmem [#allocation5], %s1103
        // Predicated region
        $region37: #{tpu_custom_call.1} parent=31 // pred_check
          %p1105 = pneg %p109
        $region38: #{tpu_custom_call.1} parent=31 // pred_check_branch
          %1107 = sbr.rel (%p1105) target = $region40
        $region39: #{tpu_custom_call.1} parent=31 // pred_region
          %s1108 = smul.u32 32, %s18
          %1110 = vsyncadd %s1101, 0
          %s1111 = smul.addr %s1108, 8
          %s1112 = scalar_lea.hbm %s3, %s1111
          %s1113 = sshll.u32 %s1104, 4
          %s1114 = int_to_ptr.vmem [resolvable:$true] %s1113
          %s1115 = sshll.u32 %s1112, 4
          %s1116 = int_to_ptr.hbm [resolvable:$true] %s1115
          %1121 = dma.vmem_to_hbm [thread:$0]  %s1114, 4096, %s1116, %s1101, 128, 128, 8
        $region40: #{tpu_custom_call.1} parent=31 // pred_fallthru
          _
      $region32: #{tpu_custom_call.1} parent=5 // pred_fallthru
        _
      %p1122 = scmp.le.s32.totalorder 2, %s13
      // Predicated region
      $region41: #{tpu_custom_call.1} parent=5 // pred_check
        %p1123 = pneg %p1122
      $region42: #{tpu_custom_call.1} parent=5 // pred_check_branch
        %1125 = sbr.rel (%p1123) target = $region44
      $region43: #{tpu_custom_call.1} parent=5 // pred_region
        %s1126 = ssub.s32 %s13, 2
        // Predicated region
        $region45: #{tpu_custom_call.1} parent=43 // pred_check
          %p1127 = pneg %p115
        $region46: #{tpu_custom_call.1} parent=43 // pred_check_branch
          %1129 = sbr.rel (%p1127) target = $region48
        $region47: #{tpu_custom_call.1} parent=43 // pred_region
          %s1130 = sand.u32 %s100, 1
          %s1131 = scalar_lea.sflag [#allocation4], %s1130
          %s1132 = sand.u32 %s100, 1
          %s1133 = smul.addr %s1132, 256
          %s1134 = scalar_lea.vmem [#allocation5], %s1133
          %1136 = dma.done %s1131, 4096
        $region48: #{tpu_custom_call.1} parent=43 // pred_fallthru
          _
      $region44: #{tpu_custom_call.1} parent=5 // pred_fallthru
        _
    $region6: #{tpu_custom_call.1} parent=1 // loop_footer
      %s17 = sadd.s32 1, %s13
    $region7: #{tpu_custom_call.1} parent=1 // loop_footer_branch
      %12 = sbr.rel target = $region3
    $region8: #{tpu_custom_call.1} parent=1 // loop_exit
      _
    %1137 = vsyncpa [#allocation3], 1
    %s1138 = scalar_lea.sflag [#allocation3], 1
    %1139 = vsyncpa %s1138, 1
    %1140 = vsyncpa [#allocation4], 1
    %s1141 = scalar_lea.sflag [#allocation4], 1
    %1142 = vsyncpa %s1141, 1

</llo_original>
